<compile_context>
chip_gen: v7x
topology: tpu7x:2x2x1
jax: 0.10.0
libtpu: 0.0.40
codegen_flags: <defaults>
</compile_context>

<pallas_src>
import jax
import jax.numpy as jnp
from jax.experimental import pallas as pl
from jax.experimental.pallas import tpu as pltpu

# Small, self-consistent shapes.
B, T, OBS, EMB, HID = 2, 8, 32, 64, 64
MOVE, ATT, XY, ABIL = 9, 2, 2, 4
LOGIT_DIM = MOVE + ATT + XY + ABIL          # 17
PAD_B = 8                                   # full sublane tile for M-dim / output
OUT_PAD = 128                               # lane-dense padded output width
SLAB_ROWS = 72                              # 64 weight rows + bias/mask rows, %8


def ppo_kernel(obs_ref, wb_ref, hh_ref, out_ref, x_sc):
    # Build a full (8, OBS) sublane tile: rows 0:B hold the last-timestep
    # observation, rows B:8 are zeros (their results are discarded in the
    # wrapper).  All matmuls then run at M=8 and the final store is an
    # unmasked full (8, 128) tile.
    x_sc[...] = jnp.zeros_like(x_sc)
    for b in range(B):                                   # static unroll, B=2
        x_sc[b:b + 1, :] = obs_ref[b, T - 1:T, :]
    x = x_sc[...]                                        # (PAD_B, OBS)

    # ---- embed + ReLU: (8, OBS) @ (OBS, EMB) ----
    e = jnp.maximum(
        jnp.dot(x, wb_ref[0, :OBS, :], preferred_element_type=jnp.float32)
        + wb_ref[0, EMB:EMB + 1, :], 0.0)
    # ---- reducer fc1 + ReLU: (8, EMB) @ (EMB, HID) ----
    h = jnp.maximum(
        jnp.dot(e, wb_ref[1, :EMB, :], preferred_element_type=jnp.float32)
        + wb_ref[1, EMB:EMB + 1, :], 0.0)

    # ---- fused heads (reducer fc2 folded in at pack time): (8, HID) @ (HID, 128)
    heads = (jnp.dot(h, hh_ref[:HID, :], preferred_element_type=jnp.float32)
             + hh_ref[HID:HID + 1, :])                   # (PAD_B, OUT_PAD)

    # Sigmoid only on the xy lanes; mask row is a packed constant (1.0/0.0).
    xy_mask = hh_ref[HID + 1:HID + 2, :]                 # (1, OUT_PAD)
    out_ref[...] = jnp.where(xy_mask > 0.5, jax.nn.sigmoid(heads), heads)


def init_params(key):
    ks = jax.random.split(key, 8)
    scale = 0.1

    def lin(k, din, dout):
        kw, kb = jax.random.split(k)
        w = scale * jax.random.normal(kw, (din, dout), jnp.float32)
        b = scale * jax.random.normal(kb, (1, dout), jnp.float32)
        return w, b

    we, be = lin(ks[0], OBS, EMB)
    w1, b1 = lin(ks[1], EMB, HID)
    w2, b2 = lin(ks[2], HID, EMB)
    wm, bm = lin(ks[3], EMB, MOVE)
    wa, ba = lin(ks[4], EMB, ATT)
    wt, bt = lin(ks[5], EMB, XY)
    wab, bab = lin(ks[6], EMB, ABIL)
    wv, bv = lin(ks[7], EMB, 1)
    return (we, be, w1, b1, w2, b2, wm, bm, wa, ba, wt, bt, wab, bab, wv, bv)


def pack_params(params):
    """Pack 16 parameter arrays into 2 contiguous slabs (one-time cost).

    Backbone slab wb: (2, 72, 64)
      layer 0: rows 0:OBS = embed weight, row 64 = embed bias, rest zero
      layer 1: rows 0:EMB = fc1 weight,   row 64 = fc1 bias,   rest zero
    Head slab hh: (72, 128) with fc2 folded in
      rows 0:HID = w2 @ W_heads, row 64 = b2 @ W_heads + b_heads,
      row 65 = sigmoid lane mask (1.0 on xy lanes), rest zero.
    Head lane layout: [move(9) | attack(2) | xy(2) | ability(4) | value(1) | pad].
    """
    (we, be, w1, b1, w2, b2, wm, bm, wa, ba, wt, bt, wab, bab, wv, bv) = params

    wb = jnp.zeros((2, SLAB_ROWS, EMB), jnp.float32)
    wb = wb.at[0, :OBS, :].set(we)
    wb = wb.at[0, EMB:EMB + 1, :].set(be)
    wb = wb.at[1, :EMB, :].set(w1)
    wb = wb.at[1, EMB:EMB + 1, :].set(b1)

    wh = jnp.zeros((EMB, OUT_PAD), jnp.float32)
    bh = jnp.zeros((1, OUT_PAD), jnp.float32)
    off = 0
    for w, b, d in ((wm, bm, MOVE), (wa, ba, ATT), (wt, bt, XY),
                    (wab, bab, ABIL), (wv, bv, 1)):
        wh = wh.at[:, off:off + d].set(w)
        bh = bh.at[:, off:off + d].set(b)
        off += d

    # Fold reducer fc2 into the head (exact: no nonlinearity on `last`).
    wh2 = w2 @ wh                                        # (HID, OUT_PAD)
    bh2 = b2 @ wh + bh                                   # (1,   OUT_PAD)

    xy_mask = jnp.zeros((OUT_PAD,), jnp.float32)
    xy_mask = xy_mask.at[MOVE + ATT:MOVE + ATT + XY].set(1.0)

    hh = jnp.zeros((SLAB_ROWS, OUT_PAD), jnp.float32)
    hh = hh.at[:HID, :].set(wh2)
    hh = hh.at[HID:HID + 1, :].set(bh2)
    hh = hh.at[HID + 1, :].set(xy_mask)
    return wb, hh


def ppo_agent_forward(obs_seq, packed):
    wb, hh = packed
    vmem = pl.BlockSpec(memory_space=pltpu.MemorySpace.VMEM)
    out = pl.pallas_call(
        ppo_kernel,
        out_shape=jax.ShapeDtypeStruct((PAD_B, OUT_PAD), jnp.float32),
        in_specs=[vmem, vmem, vmem],
        out_specs=vmem,
        scratch_shapes=[pltpu.VMEM((PAD_B, OBS), jnp.float32)],
    )(obs_seq, wb, hh)

    logits = out[:B, :LOGIT_DIM]             # (B, 17)
    value = out[:B, LOGIT_DIM]               # (B,)   — squeeze(-1)
    return logits, value


def ppo_agent_reference(obs_seq, params):
    # Full all-timestep reference, matching the original PyTorch module exactly.
    (we, be, w1, b1, w2, b2, wm, bm, wa, ba, wt, bt, wab, bab, wv, bv) = params
    x = obs_seq.reshape(B * T, OBS)
    e = jnp.maximum(x @ we + be, 0.0)
    h = jnp.maximum(e @ w1 + b1, 0.0)
    feats = (h @ w2 + b2).reshape(B, T, EMB)
    last = feats[:, -1, :]
    move = last @ wm + bm
    attack = last @ wa + ba
    xy = jax.nn.sigmoid(last @ wt + bt)
    abil = last @ wab + bab
    logits = jnp.concatenate([move, attack, xy, abil], axis=-1)
    value = (last @ wv + bv)[:, 0]
    return logits, value


if __name__ == "__main__":
    key = jax.random.PRNGKey(0)
    k_obs, k_params = jax.random.split(key)
    obs_seq = jax.random.normal(k_obs, (B, T, OBS), jnp.float32)
    params = init_params(k_params)
    packed = pack_params(params)

    logits, value = ppo_agent_forward(obs_seq, packed)
    jax.block_until_ready((logits, value))

    ref_logits, ref_value = ppo_agent_reference(obs_seq, params)
    assert logits.shape == (B, LOGIT_DIM) and value.shape == (B,)
    assert jnp.allclose(logits, ref_logits, atol=1e-5, rtol=1e-5)
    assert jnp.allclose(value, ref_value, atol=1e-5, rtol=1e-5)

    print("KERNEL_OK")
</pallas_src>

<mosaic_0001>
module attributes {stable_mosaic.version = 11 : i64} {
  func.func @ppo_kernel(%arg0: memref<2x8x32xf32, #tpu.memory_space<vmem>>, %arg1: memref<2x72x64xf32, #tpu.memory_space<vmem>>, %arg2: memref<72x128xf32, #tpu.memory_space<vmem>>, %arg3: memref<8x128xf32, #tpu.memory_space<vmem>>, %arg4: memref<8x32xf32, #tpu.memory_space<vmem>>) attributes {dimension_semantics = [], scalar_prefetch = 0 : i64, scratch_operands = 1 : i64, tpu.core_type = #tpu.core_type<tc>} {
    %cst = arith.constant 0.000000e+00 : f32
    %0 = vector.broadcast %cst : f32 to vector<8x32xf32>
    %c0 = arith.constant 0 : index
    %c0_0 = arith.constant 0 : index
    %1 = vector.load %arg4[%c0, %c0_0] : memref<8x32xf32, #tpu.memory_space<vmem>>, vector<8x32xf32>
    tpu.vector_store %arg4[%c0, %c0_0], %0 {strides = array<i32>} : memref<8x32xf32, #tpu.memory_space<vmem>>, vector<8x32xf32>,
    %c0_1 = arith.constant 0 : index
    %c7 = arith.constant 7 : index
    %c0_2 = arith.constant 0 : index
    %2 = vector.load %arg0[%c0_1, %c7, %c0_2] : memref<2x8x32xf32, #tpu.memory_space<vmem>>, vector<1x1x32xf32>
    %3 = vector.shape_cast %2 : vector<1x1x32xf32> to vector<1x32xf32>
    %c0_3 = arith.constant 0 : index
    %c0_4 = arith.constant 0 : index
    %4 = vector.load %arg4[%c0_3, %c0_4] : memref<8x32xf32, #tpu.memory_space<vmem>>, vector<1x32xf32>
    tpu.vector_store %arg4[%c0_3, %c0_4], %3 {strides = array<i32>} : memref<8x32xf32, #tpu.memory_space<vmem>>, vector<1x32xf32>,
    %c1 = arith.constant 1 : index
    %c7_5 = arith.constant 7 : index
    %c0_6 = arith.constant 0 : index
    %5 = vector.load %arg0[%c1, %c7_5, %c0_6] : memref<2x8x32xf32, #tpu.memory_space<vmem>>, vector<1x1x32xf32>
    %6 = vector.shape_cast %5 : vector<1x1x32xf32> to vector<1x32xf32>
    %c1_7 = arith.constant 1 : index
    %c0_8 = arith.constant 0 : index
    %7 = vector.load %arg4[%c1_7, %c0_8] : memref<8x32xf32, #tpu.memory_space<vmem>>, vector<1x32xf32>
    tpu.vector_store %arg4[%c1_7, %c0_8], %6 {strides = array<i32>} : memref<8x32xf32, #tpu.memory_space<vmem>>, vector<1x32xf32>,
    %c0_9 = arith.constant 0 : index
    %c0_10 = arith.constant 0 : index
    %8 = vector.load %arg4[%c0_9, %c0_10] : memref<8x32xf32, #tpu.memory_space<vmem>>, vector<8x32xf32>
    %c0_11 = arith.constant 0 : index
    %c0_12 = arith.constant 0 : index
    %c0_13 = arith.constant 0 : index
    %9 = vector.load %arg1[%c0_11, %c0_12, %c0_13] : memref<2x72x64xf32, #tpu.memory_space<vmem>>, vector<1x32x64xf32>
    %10 = vector.shape_cast %9 : vector<1x32x64xf32> to vector<32x64xf32>
    %cst_14 = arith.constant dense<0.000000e+00> : vector<8x64xf32>
    %11 = tpu.matmul %8, %10, %cst_14 {dimension_numbers = #tpu.dot_dimension_numbers<[1], [0], [0], [1], [0, 0, 1, 1], [], []>} : vector<8x32xf32>, vector<32x64xf32>, vector<8x64xf32> -> vector<8x64xf32>
    %c0_15 = arith.constant 0 : index
    %c64 = arith.constant 64 : index
    %c0_16 = arith.constant 0 : index
    %12 = vector.load %arg1[%c0_15, %c64, %c0_16] : memref<2x72x64xf32, #tpu.memory_space<vmem>>, vector<1x1x64xf32>
    %13 = vector.shape_cast %12 : vector<1x1x64xf32> to vector<1x64xf32>
    %14 = vector.broadcast %13 : vector<1x64xf32> to vector<8x64xf32>
    %15 = arith.addf %11, %14 : vector<8x64xf32>
    %cst_17 = arith.constant 0.000000e+00 : f32
    %16 = vector.broadcast %cst_17 : f32 to vector<8x64xf32>
    %17 = arith.maximumf %15, %16 : vector<8x64xf32>
    %c1_18 = arith.constant 1 : index
    %c0_19 = arith.constant 0 : index
    %c0_20 = arith.constant 0 : index
    %18 = vector.load %arg1[%c1_18, %c0_19, %c0_20] : memref<2x72x64xf32, #tpu.memory_space<vmem>>, vector<1x64x64xf32>
    %19 = vector.shape_cast %18 : vector<1x64x64xf32> to vector<64x64xf32>
    %cst_21 = arith.constant dense<0.000000e+00> : vector<8x64xf32>
    %20 = tpu.matmul %17, %19, %cst_21 {dimension_numbers = #tpu.dot_dimension_numbers<[1], [0], [0], [1], [0, 0, 1, 1], [], []>} : vector<8x64xf32>, vector<64x64xf32>, vector<8x64xf32> -> vector<8x64xf32>
    %c1_22 = arith.constant 1 : index
    %c64_23 = arith.constant 64 : index
    %c0_24 = arith.constant 0 : index
    %21 = vector.load %arg1[%c1_22, %c64_23, %c0_24] : memref<2x72x64xf32, #tpu.memory_space<vmem>>, vector<1x1x64xf32>
    %22 = vector.shape_cast %21 : vector<1x1x64xf32> to vector<1x64xf32>
    %23 = vector.broadcast %22 : vector<1x64xf32> to vector<8x64xf32>
    %24 = arith.addf %20, %23 : vector<8x64xf32>
    %cst_25 = arith.constant 0.000000e+00 : f32
    %25 = vector.broadcast %cst_25 : f32 to vector<8x64xf32>
    %26 = arith.maximumf %24, %25 : vector<8x64xf32>
    %c0_26 = arith.constant 0 : index
    %c0_27 = arith.constant 0 : index
    %27 = vector.load %arg2[%c0_26, %c0_27] : memref<72x128xf32, #tpu.memory_space<vmem>>, vector<64x128xf32>
    %cst_28 = arith.constant dense<0.000000e+00> : vector<8x128xf32>
    %28 = tpu.matmul %26, %27, %cst_28 {dimension_numbers = #tpu.dot_dimension_numbers<[1], [0], [0], [1], [0, 0, 1, 1], [], []>} : vector<8x64xf32>, vector<64x128xf32>, vector<8x128xf32> -> vector<8x128xf32>
    %c64_29 = arith.constant 64 : index
    %c0_30 = arith.constant 0 : index
    %29 = vector.load %arg2[%c64_29, %c0_30] : memref<72x128xf32, #tpu.memory_space<vmem>>, vector<1x128xf32>
    %30 = vector.broadcast %29 : vector<1x128xf32> to vector<8x128xf32>
    %31 = arith.addf %28, %30 : vector<8x128xf32>
    %c65 = arith.constant 65 : index
    %c0_31 = arith.constant 0 : index
    %32 = vector.load %arg2[%c65, %c0_31] : memref<72x128xf32, #tpu.memory_space<vmem>>, vector<1x128xf32>
    %cst_32 = arith.constant 5.000000e-01 : f32
    %33 = vector.broadcast %cst_32 : f32 to vector<1x128xf32>
    %34 = arith.cmpf ogt, %32, %33 : vector<1x128xf32>
    %35 = arith.negf %31 : vector<8x128xf32>
    %36 = math.exp %35 : vector<8x128xf32>
    %cst_33 = arith.constant 1.000000e+00 : f32
    %37 = vector.broadcast %cst_33 : f32 to vector<8x128xf32>
    %38 = arith.addf %37, %36 : vector<8x128xf32>
    %39 = arith.divf %37, %38 : vector<8x128xf32>
    %40 = vector.shape_cast %34 : vector<1x128xi1> to vector<1x128xi1>
    %41 = vector.broadcast %40 : vector<1x128xi1> to vector<8x128xi1>
    %42 = arith.select %41, %39, %31 : vector<8x128xi1>, vector<8x128xf32>
    %c0_34 = arith.constant 0 : index
    %c0_35 = arith.constant 0 : index
    %43 = vector.load %arg3[%c0_34, %c0_35] : memref<8x128xf32, #tpu.memory_space<vmem>>, vector<8x128xf32>
    tpu.vector_store %arg3[%c0_34, %c0_35], %42 {strides = array<i32>} : memref<8x128xf32, #tpu.memory_space<vmem>>, vector<8x128xf32>,
    return
  }
}

</mosaic_0001>

<llo_original>
// kernel: tpu_custom_call.1
$region0: #{tpu_custom_call.1}
  #allocation0 [shape = 'u32[]', space=smem, size = 0x4, offset = 0x4, fixed_abs, tag = 'smem constant byte address 0x4 - core index']
  #allocation1 [shape = 'u32[144,128]{1,0:T(1,128)}', space=vmem, size = 0x12000, scoped, tag = 'internal scratch']
  #allocation2 [shape = 'f32[8,32]{1,0:T(8,128)}', space=vmem, size = 0x1000, scoped, tag = 'scratch operand']
  %s0 = inlined_call_operand.vmem [shape: f32[2,8,32], index: 0, kind: input, shape index: {}]
  %s1 = inlined_call_operand.vmem [shape: f32[2,72,64], index: 1, kind: input, shape index: {}]
  %s2 = inlined_call_operand.vmem [shape: f32[72,128], index: 2, kind: input, shape index: {}]
  %s3 = inlined_call_operand.hbm [shape: f32[8,128], index: 3, kind: output, shape index: {}]
  %s4 = sld [smem:[#allocation0]]
  $region22: #{tpu_custom_call.1} parent=0
    _
  %s6 = ssub.s32 1, %s4
  %s7 = scalar_select 0, %s6, %s4
  $region1: #{tpu_custom_call.1} parent=0
    #allocation3 [shape = 'u8[4096]{0}', space=vmem, size = 0x1000, scoped, tag = 'output window, operand 0, single buffered']
    #allocation4 [shape = 's32[1]{0}', space=sflag, size = 0x4, scoped, tag = 'scoped memory for tpu_custom_call.1']
    %8 = vsyncpa [#allocation4], 0
    // Predicated region
    $region2: #{tpu_custom_call.1} parent=1 // pred_check
      _
    $region3: #{tpu_custom_call.1} parent=1 // pred_check_branch
      %10 = sbr.rel (0) target = $region5
    $region4: #{tpu_custom_call.1} parent=1 // pred_region
      _
    $region5: #{tpu_custom_call.1} parent=1 // pred_fallthru
      _
    // Predicated region
    $region6: #{tpu_custom_call.1} parent=1 // pred_check
      _
    $region7: #{tpu_custom_call.1} parent=1 // pred_check_branch
      %12 = sbr.rel (0) target = $region9
    $region8: #{tpu_custom_call.1} parent=1 // pred_region
      _
    $region9: #{tpu_custom_call.1} parent=1 // pred_fallthru
      _
    // Predicated region
    $region10: #{tpu_custom_call.1} parent=1 // pred_check
      _
    $region11: #{tpu_custom_call.1} parent=1 // pred_check_branch
      %14 = sbr.rel (0) target = $region13
    $region12: #{tpu_custom_call.1} parent=1 // pred_region
      _
    $region13: #{tpu_custom_call.1} parent=1 // pred_fallthru
      _
    %vm15 = vcmask 261120
    %16 = vst.msk [vmem:[#allocation2] sm:$0xff] %vm15, 0.0
    %v17 = vld [vmem:[%s0 + $0x7] sm:$0x1]
    %vm18 = vcmask 253952
    %19 = vst.msk [vmem:[#allocation2] sm:$0x1] %vm18, %v17
    %s20 = scalar_lea.vmem %s0, 8
    %v21 = vld [vmem:[%s20 + $0x7] sm:$0x1]
    %22 = vst.msk [vmem:[#allocation2 + $0x1] sm:$0x1] %vm18, %v21
    %v23 = vld [vmem:[#allocation2] sm:$0xff]
    %v24 = vld [vmem:[%s1] sm:$0xff]
    %v25 = vld [vmem:[%s1 + $0x8] sm:$0xff]
    %v26 = vld [vmem:[%s1 + $0x10] sm:$0xff]
    %v27 = vld [vmem:[%s1 + $0x18] sm:$0xff]
    %v28 = vld [vmem:[%s1 + $0x40] sm:$0x1]
    %v29 = vlaneseq
    %v30 = vshrl.u32 %v29, 7
    %v31 = vsub.s32 0, %v30
    %v32 = vrot.slane %v28, %v31
    %v34 = vsel %vm15, %v23, 0
    %36 = vmatprep.subr.mxu0 0.0
    %37 = vmatpush1.msra.mxu0 %v24
    %38 = vmatprep.subr.mxu0 0.0
    %39 = vmatpush1.msra.mxu0 %v25
    %40 = vmatprep.subr.mxu0 0.0
    %41 = vmatpush1.msra.mxu0 %v26
    %42 = vmatprep.subr.mxu0 0.0
    %43 = vmatpush1.msra.mxu0 %v27
    %44 = vmatprep.subr.mxu0 0.0
    %45 = vmatpush1.msra.mxu0 0.0
    %46 = vmatprep.subr.mxu0 0.0
    %47 = vmatpush1.msra.mxu0 0.0
    %48 = vmatprep.subr.mxu0 0.0
    %49 = vmatpush1.msra.mxu0 0.0
    %50 = vmatprep.subr.mxu0 0.0
    %51 = vmatpush1.msra.mxu0 0.0
    %52 = vmatprep.subr.mxu0 0.0
    %53 = vmatpush1.msra.mxu0 0.0
    %54 = vmatprep.subr.mxu0 0.0
    %55 = vmatpush1.msra.mxu0 0.0
    %56 = vmatprep.subr.mxu0 0.0
    %57 = vmatpush1.msra.mxu0 0.0
    %58 = vmatprep.subr.mxu0 0.0
    %59 = vmatpush1.msra.mxu0 0.0
    %60 = vmatprep.subr.mxu0 0.0
    %61 = vmatpush1.msra.mxu0 0.0
    %62 = vmatprep.subr.mxu0 0.0
    %63 = vmatpush1.msra.mxu0 0.0
    %64 = vmatprep.subr.mxu0 0.0
    %65 = vmatpush1.msra.mxu0 0.0
    %66 = vmatprep.subr.mxu0 0.0
    %67 = vmatpush1.msra.mxu0 0.0
    %68 = vmatprep.subr.mxu0 0.0
    %69 = vmatpush1.msra.mxu0 0.0
    %70 = vmatprep.subr.mxu0 0.0
    %71 = vmatpush1.msra.mxu0 0.0
    %72 = vmatprep.subr.mxu0 0.0
    %73 = vmatpush1.msra.mxu0 0.0
    %74 = vmatprep.subr.mxu0 0.0
    %75 = vmatpush1.msra.mxu0 0.0
    %76 = vmatprep.subr.mxu0 0.0
    %77 = vmatpush1.msra.mxu0 0.0
    %78 = vmatprep.subr.mxu0 0.0
    %79 = vmatpush1.msra.mxu0 0.0
    %80 = vmatprep.subr.mxu0 0.0
    %81 = vmatpush1.msra.mxu0 0.0
    %82 = vmatprep.subr.mxu0 0.0
    %83 = vmatpush1.msra.mxu0 0.0
    %84 = vmatprep.subr.mxu0 0.0
    %85 = vmatpush1.msra.mxu0 0.0
    %86 = vmatprep.subr.mxu0 0.0
    %87 = vmatpush1.msra.mxu0 0.0
    %88 = vmatprep.subr.mxu0 0.0
    %89 = vmatpush1.msra.mxu0 0.0
    %90 = vmatprep.subr.mxu0 0.0
    %91 = vmatpush1.msra.mxu0 0.0
    %92 = vmatprep.subr.mxu0 0.0
    %93 = vmatpush1.msra.mxu0 0.0
    %94 = vmatprep.subr.mxu0 0.0
    %95 = vmatpush1.msra.mxu0 0.0
    %96 = vmatprep.subr.mxu0 0.0
    %97 = vmatpush1.msra.mxu0 0.0
    %98 = vmatprep.subr.mxu0 0.0
    %99 = vmatpush1.msra.mxu0 0.0
    %100 = vmatprep.mubr.f32.mxu0 0.0
    %101 = vmatmul.mubr.f32.gmra.mrb[0].mxu0 %v34
    %v102 = vpop.f32.mrb[0].mxu0
    %v103 = vadd.f32 %v32, %v102
    %v104 = vpop.f32.mrb[0].mxu0
    %105 = vdwg.mxu0
    %v106 = vmax.f32 %v103, 0.0
    %s107 = scalar_lea.vmem %s1, 72
    %v108 = vld [vmem:[%s107] sm:$0xff]
    %v109 = vld [vmem:[%s107 + $0x8] sm:$0xff]
    %v110 = vld [vmem:[%s107 + $0x10] sm:$0xff]
    %v111 = vld [vmem:[%s107 + $0x18] sm:$0xff]
    %v112 = vld [vmem:[%s107 + $0x20] sm:$0xff]
    %v113 = vld [vmem:[%s107 + $0x28] sm:$0xff]
    %v114 = vld [vmem:[%s107 + $0x30] sm:$0xff]
    %v115 = vld [vmem:[%s107 + $0x38] sm:$0xff]
    %v116 = vld [vmem:[%s107 + $0x40] sm:$0x1]
    %v117 = vlaneseq
    %v118 = vshrl.u32 %v117, 7
    %v119 = vsub.s32 0, %v118
    %v120 = vrot.slane %v116, %v119
    %vm121 = vcmask 523264
    %v123 = vsel %vm121, %v106, 0
    %125 = vmatprep.subr.mxu0 0.0
    %126 = vmatpush1.msra.mxu0 %v108
    %127 = vmatprep.subr.mxu0 0.0
    %128 = vmatpush1.msra.mxu0 %v109
    %129 = vmatprep.subr.mxu0 0.0
    %130 = vmatpush1.msra.mxu0 %v110
    %131 = vmatprep.subr.mxu0 0.0
    %132 = vmatpush1.msra.mxu0 %v111
    %133 = vmatprep.subr.mxu0 0.0
    %134 = vmatpush1.msra.mxu0 %v112
    %135 = vmatprep.subr.mxu0 0.0
    %136 = vmatpush1.msra.mxu0 %v113
    %137 = vmatprep.subr.mxu0 0.0
    %138 = vmatpush1.msra.mxu0 %v114
    %139 = vmatprep.subr.mxu0 0.0
    %140 = vmatpush1.msra.mxu0 %v115
    %141 = vmatprep.subr.mxu0 0.0
    %142 = vmatpush1.msra.mxu0 0.0
    %143 = vmatprep.subr.mxu0 0.0
    %144 = vmatpush1.msra.mxu0 0.0
    %145 = vmatprep.subr.mxu0 0.0
    %146 = vmatpush1.msra.mxu0 0.0
    %147 = vmatprep.subr.mxu0 0.0
    %148 = vmatpush1.msra.mxu0 0.0
    %149 = vmatprep.subr.mxu0 0.0
    %150 = vmatpush1.msra.mxu0 0.0
    %151 = vmatprep.subr.mxu0 0.0
    %152 = vmatpush1.msra.mxu0 0.0
    %153 = vmatprep.subr.mxu0 0.0
    %154 = vmatpush1.msra.mxu0 0.0
    %155 = vmatprep.subr.mxu0 0.0
    %156 = vmatpush1.msra.mxu0 0.0
    %157 = vmatprep.subr.mxu0 0.0
    %158 = vmatpush1.msra.mxu0 0.0
    %159 = vmatprep.subr.mxu0 0.0
    %160 = vmatpush1.msra.mxu0 0.0
    %161 = vmatprep.subr.mxu0 0.0
    %162 = vmatpush1.msra.mxu0 0.0
    %163 = vmatprep.subr.mxu0 0.0
    %164 = vmatpush1.msra.mxu0 0.0
    %165 = vmatprep.subr.mxu0 0.0
    %166 = vmatpush1.msra.mxu0 0.0
    %167 = vmatprep.subr.mxu0 0.0
    %168 = vmatpush1.msra.mxu0 0.0
    %169 = vmatprep.subr.mxu0 0.0
    %170 = vmatpush1.msra.mxu0 0.0
    %171 = vmatprep.subr.mxu0 0.0
    %172 = vmatpush1.msra.mxu0 0.0
    %173 = vmatprep.subr.mxu0 0.0
    %174 = vmatpush1.msra.mxu0 0.0
    %175 = vmatprep.subr.mxu0 0.0
    %176 = vmatpush1.msra.mxu0 0.0
    %177 = vmatprep.subr.mxu0 0.0
    %178 = vmatpush1.msra.mxu0 0.0
    %179 = vmatprep.subr.mxu0 0.0
    %180 = vmatpush1.msra.mxu0 0.0
    %181 = vmatprep.subr.mxu0 0.0
    %182 = vmatpush1.msra.mxu0 0.0
    %183 = vmatprep.subr.mxu0 0.0
    %184 = vmatpush1.msra.mxu0 0.0
    %185 = vmatprep.subr.mxu0 0.0
    %186 = vmatpush1.msra.mxu0 0.0
    %187 = vmatprep.subr.mxu0 0.0
    %188 = vmatpush1.msra.mxu0 0.0
    %189 = vmatprep.mubr.f32.mxu0 0.0
    %190 = vmatmul.mubr.f32.gmra.mrb[0].mxu0 %v123
    %v191 = vpop.f32.mrb[0].mxu0
    %v192 = vadd.f32 %v120, %v191
    %v193 = vpop.f32.mrb[0].mxu0
    %194 = vdwg.mxu0
    %v195 = vmax.f32 %v192, 0.0
    %v196 = vld [vmem:[%s2] sm:$0xff]
    %v197 = vld [vmem:[%s2 + $0x8] sm:$0xff]
    %v198 = vld [vmem:[%s2 + $0x10] sm:$0xff]
    %v199 = vld [vmem:[%s2 + $0x18] sm:$0xff]
    %v200 = vld [vmem:[%s2 + $0x20] sm:$0xff]
    %v201 = vld [vmem:[%s2 + $0x28] sm:$0xff]
    %v202 = vld [vmem:[%s2 + $0x30] sm:$0xff]
    %v203 = vld [vmem:[%s2 + $0x38] sm:$0xff]
    %v204 = vld [vmem:[%s2 + $0x40] sm:$0x1]
    %v205 = vlaneseq
    %v206 = vshrl.u32 %v205, 7
    %v207 = vsub.s32 0, %v206
    %v208 = vrot.slane %v204, %v207
    %v210 = vsel %vm121, %v195, 0
    %212 = vmatprep.subr.mxu0 0.0
    %213 = vmatpush1.msra.mxu0 %v196
    %214 = vmatprep.subr.mxu0 0.0
    %215 = vmatpush1.msra.mxu0 %v197
    %216 = vmatprep.subr.mxu0 0.0
    %217 = vmatpush1.msra.mxu0 %v198
    %218 = vmatprep.subr.mxu0 0.0
    %219 = vmatpush1.msra.mxu0 %v199
    %220 = vmatprep.subr.mxu0 0.0
    %221 = vmatpush1.msra.mxu0 %v200
    %222 = vmatprep.subr.mxu0 0.0
    %223 = vmatpush1.msra.mxu0 %v201
    %224 = vmatprep.subr.mxu0 0.0
    %225 = vmatpush1.msra.mxu0 %v202
    %226 = vmatprep.subr.mxu0 0.0
    %227 = vmatpush1.msra.mxu0 %v203
    %228 = vmatprep.subr.mxu0 0.0
    %229 = vmatpush1.msra.mxu0 0.0
    %230 = vmatprep.subr.mxu0 0.0
    %231 = vmatpush1.msra.mxu0 0.0
    %232 = vmatprep.subr.mxu0 0.0
    %233 = vmatpush1.msra.mxu0 0.0
    %234 = vmatprep.subr.mxu0 0.0
    %235 = vmatpush1.msra.mxu0 0.0
    %236 = vmatprep.subr.mxu0 0.0
    %237 = vmatpush1.msra.mxu0 0.0
    %238 = vmatprep.subr.mxu0 0.0
    %239 = vmatpush1.msra.mxu0 0.0
    %240 = vmatprep.subr.mxu0 0.0
    %241 = vmatpush1.msra.mxu0 0.0
    %242 = vmatprep.subr.mxu0 0.0
    %243 = vmatpush1.msra.mxu0 0.0
    %244 = vmatprep.subr.mxu0 0.0
    %245 = vmatpush1.msra.mxu0 0.0
    %246 = vmatprep.subr.mxu0 0.0
    %247 = vmatpush1.msra.mxu0 0.0
    %248 = vmatprep.subr.mxu0 0.0
    %249 = vmatpush1.msra.mxu0 0.0
    %250 = vmatprep.subr.mxu0 0.0
    %251 = vmatpush1.msra.mxu0 0.0
    %252 = vmatprep.subr.mxu0 0.0
    %253 = vmatpush1.msra.mxu0 0.0
    %254 = vmatprep.subr.mxu0 0.0
    %255 = vmatpush1.msra.mxu0 0.0
    %256 = vmatprep.subr.mxu0 0.0
    %257 = vmatpush1.msra.mxu0 0.0
    %258 = vmatprep.subr.mxu0 0.0
    %259 = vmatpush1.msra.mxu0 0.0
    %260 = vmatprep.subr.mxu0 0.0
    %261 = vmatpush1.msra.mxu0 0.0
    %262 = vmatprep.subr.mxu0 0.0
    %263 = vmatpush1.msra.mxu0 0.0
    %264 = vmatprep.subr.mxu0 0.0
    %265 = vmatpush1.msra.mxu0 0.0
    %266 = vmatprep.subr.mxu0 0.0
    %267 = vmatpush1.msra.mxu0 0.0
    %268 = vmatprep.subr.mxu0 0.0
    %269 = vmatpush1.msra.mxu0 0.0
    %270 = vmatprep.subr.mxu0 0.0
    %271 = vmatpush1.msra.mxu0 0.0
    %272 = vmatprep.subr.mxu0 0.0
    %273 = vmatpush1.msra.mxu0 0.0
    %274 = vmatprep.subr.mxu0 0.0
    %275 = vmatpush1.msra.mxu0 0.0
    %276 = vmatprep.mubr.f32.mxu0 0.0
    %277 = vmatmul.mubr.f32.gmra.mrb[0].mxu0 %v210
    %v278 = vpop.f32.mrb[0].mxu0
    %v279 = vadd.f32 %v208, %v278
    %v280 = vpop.f32.mrb[0].mxu0
    %281 = vdwg.mxu0
    %v282 = vld [vmem:[%s2 + $0x41] sm:$0x1]
    %vm283 = vcmp.gt.f32.partialorder %v282, 0.5
    %v284 = vxor.u32 %v279, 2147483648
    %v285 = vmul.f32 %v284, 1.442695
    %v286 = vpow.pop %v285
    %v287 = vadd.f32 %v286, 1.0
    %v288 = vrcp.pop %v287
    %v289 = vmul.f32 1.0, %v288
    %v290 = vsel %vm283, 1, 0
    %v291 = vlaneseq
    %v292 = vshrl.u32 %v291, 7
    %v293 = vsub.s32 0, %v292
    %v294 = vrot.slane %v290, %v293
    %vm295 = vcmp.eq.s32.totalorder %v294, 1
    %v296 = vsel %vm295, %v289, %v279
    %297 = vst [vmem:[#allocation3] sm:$0xff] %v296
    // Predicated region
    $region14: #{tpu_custom_call.1} parent=1 // pred_check
      _
    $region15: #{tpu_custom_call.1} parent=1 // pred_check_branch
      %299 = sbr.rel (0) target = $region17
    $region16: #{tpu_custom_call.1} parent=1 // pred_region
      %s301 = ssub.s32 128, 128
      %302 = vsyncadd [#allocation4], %s301
      %s304 = sshll.u32 [#allocation3], 4
      %s305 = int_to_ptr.vmem [resolvable:$true] %s304
      %307 = dma.vmem_to_hbm [thread:$0]  %s305, 128, %s3, [#allocation4]
    $region17: #{tpu_custom_call.1} parent=1 // pred_fallthru
      _
    // Predicated region
    $region18: #{tpu_custom_call.1} parent=1 // pred_check
      _
    $region19: #{tpu_custom_call.1} parent=1 // pred_check_branch
      %309 = sbr.rel (0) target = $region21
    $region20: #{tpu_custom_call.1} parent=1 // pred_region
      %310 = dma.done [#allocation4], 128
    $region21: #{tpu_custom_call.1} parent=1 // pred_fallthru
      _
    %311 = vsyncpa [#allocation4], 1

</llo_original>
